<compile_context>
chip_gen: v5e
topology: v5e:2x2
jax: 0.10.0
libtpu: 0.0.40
codegen_flags: <defaults>
</compile_context>

<pallas_src>
import functools

import jax
import jax.numpy as jnp
from jax.experimental import pallas as pl
from jax.experimental.pallas import tpu as pltpu


def _pick_batch_tile(batch, window):
    """Largest batch tile <= ~256/K rows that still leaves >=2 grid steps."""
    target = max(1, 256 // max(window, 1))
    divisors = [d for d in range(1, batch + 1) if batch % d == 0]
    two_step = [d for d in divisors if d <= target and batch // d >= 2]
    capped = [d for d in divisors if d <= target]
    if two_step:
        return max(two_step)
    if capped:
        return max(capped)
    return 1


def _temporal_attn_kernel(x_ref, w12_ref, blin_ref, a_ref, bias_ref, o_ref, *,
                          alpha, bt, win, nfeat, emb, mxu_dtype):
    # x_ref: (Bt, K, F)   w12_ref: (F, 2E)   blin_ref/a_ref: (1, E)
    # bias_ref: (K, K)    o_ref: (Bt, K, F)
    x = x_ref[...]                                   # (Bt, K, F)
    w12 = w12_ref[...]                               # (F, 2E) resident weights
    blin = blin_ref[...]                             # (1, E)
    a3 = a_ref[...].reshape(1, 1, emb)               # (1, 1, E) hoisted broadcast
    bias = bias_ref[...]                             # (K, K)

    # One fused MXU matmul for all Bt*K rows: columns [0:E) = x@W1^T,
    # columns [E:2E) = x@W2^T.  f32 accumulation always.
    lhs = x.reshape(bt * win, nfeat)                 # leading-dim merge (tile aligned)
    if mxu_dtype is not None:
        lhs = lhs.astype(mxu_dtype)
        w12 = w12.astype(mxu_dtype)
    lr = jnp.dot(lhs, w12, preferred_element_type=jnp.float32)   # (Bt*K, 2E)
    lr = lr.reshape(bt, win, 2 * emb)

    # Short static unroll over the batch tile (per feedback); all 2-D/3-D ops.
    for b in range(bt):
        left = lr[b, :, :emb] + blin                 # (K, E)  lin bias added once
        right = lr[b, :, emb:]                       # (K, E)
        z = left[:, None, :] + right[None, :, :]     # (K, K, E) pairwise pre-act
        z = jnp.where(z >= 0, z, alpha * z)          # LeakyReLU

        # e[i, j] = z[i, j, :] . a   (+ attention bias)
        s = jnp.sum(z * a3, axis=-1) + bias          # (K, K)

        # Online-style softmax with normalization deferred past the PV matmul.
        s_max = jnp.max(s, axis=-1, keepdims=True)
        p = jnp.exp(s - s_max)                       # (K, K) unnormalized
        denom = jnp.sum(p, axis=-1, keepdims=True)   # (K, 1) f32

        x_b = x[b]                                   # (K, F)
        if mxu_dtype is not None:
            p_mm = p.astype(mxu_dtype)
            x_mm = x_b.astype(mxu_dtype)
        else:
            p_mm = p
            x_mm = x_b
        h_un = jnp.dot(p_mm, x_mm, preferred_element_type=jnp.float32)  # (K, F)

        # f32 EUP reciprocal of the row sum (free slot), then sigmoid.
        h = jax.nn.sigmoid(h_un * pl.reciprocal(denom, approx=True))
        o_ref[b] = h.astype(o_ref.dtype)


def temporal_attention_forward(x, lin_weight, lin_bias, a, attn_bias, *,
                               alpha=0.2, batch_tile=None, mxu_dtype=None):
    """GATv2 temporal attention forward (eval mode).

    x:          [B, K, F]   (batch, window_size, n_features)
    lin_weight: [E, 2F]     (torch nn.Linear weight, E = embed_dim = 2F)
    lin_bias:   [E]
    a:          [E, 1]      attention vector
    attn_bias:  [K, K]
    mxu_dtype:  optional MXU operand dtype (e.g. jnp.bfloat16 on v6e/v7x);
                accumulation and all elementwise math stay in f32.
    returns     [B, K, F]
    """
    B, K, F = x.shape
    E, twoF = lin_weight.shape
    assert twoF == 2 * F, f"lin weight expects 2*n_features={2*F}, got {twoF}"
    assert a.shape == (E, 1)
    assert attn_bias.shape == (K, K)

    bt = _pick_batch_tile(B, K) if batch_tile is None else batch_tile
    assert B % bt == 0, f"batch_tile {bt} must divide batch {B}"

    # Split-and-fuse the concat-Linear: [W1^T | W2^T] along the output axis so
    # a single matmul produces both halves.
    w12t = jnp.concatenate([lin_weight[:, :F].T, lin_weight[:, F:].T], axis=1)  # (F, 2E)
    blin = lin_bias.reshape(1, E)
    a_row = a.reshape(1, E)

    kernel = functools.partial(
        _temporal_attn_kernel, alpha=float(alpha), bt=bt, win=K, nfeat=F,
        emb=E, mxu_dtype=mxu_dtype)

    return pl.pallas_call(
        kernel,
        out_shape=jax.ShapeDtypeStruct((B, K, F), x.dtype),
        grid_spec=pltpu.PrefetchScalarGridSpec(
            num_scalar_prefetch=0,
            grid=(B // bt,),
            in_specs=[
                pl.BlockSpec((bt, K, F), lambda i: (i, 0, 0)),   # x tile
                pl.BlockSpec((F, 2 * E), lambda i: (0, 0)),      # fused W12^T (resident)
                pl.BlockSpec((1, E), lambda i: (0, 0)),          # lin bias
                pl.BlockSpec((1, E), lambda i: (0, 0)),          # a
                pl.BlockSpec((K, K), lambda i: (0, 0)),          # attn bias
            ],
            out_specs=pl.BlockSpec((bt, K, F), lambda i: (i, 0, 0)),
        ),
        compiler_params=pltpu.CompilerParams(
            dimension_semantics=("parallel",),
        ),
    )(x, w12t, blin, a_row, attn_bias)


def _reference_forward(x, lin_weight, lin_bias, a, attn_bias, alpha):
    """Pure-JAX mirror of the PyTorch module (GATv2, eval mode)."""
    B, K, F = x.shape
    hi = jax.lax.Precision.HIGHEST
    rep = jnp.repeat(x, K, axis=1)                     # repeat_interleave(K, dim=1)
    alt = jnp.tile(x, (1, K, 1))                       # repeat(1, K, 1)
    combined = jnp.concatenate([rep, alt], axis=2)     # (B, K*K, 2F)
    a_input = combined.reshape(B, K, K, 2 * F)
    z = jnp.einsum("bijf,ef->bije", a_input, lin_weight, precision=hi) + lin_bias
    z = jnp.where(z >= 0, z, alpha * z)                # LeakyReLU
    e = jnp.einsum("bije,eo->bijo", z, a, precision=hi)[..., 0]
    e = e + attn_bias
    attn = jax.nn.softmax(e, axis=2)
    h = jax.nn.sigmoid(jnp.einsum("bij,bjf->bif", attn, x, precision=hi))
    return h


if __name__ == "__main__":
    key = jax.random.PRNGKey(0)
    k1, k2, k3, k4, k5 = jax.random.split(key, 5)

    # batch=2, window_size=8, n_features=16 -> GATv2 embed_dim E = 2*16 = 32
    B, K, F = 2, 8, 16
    E = 2 * F
    alpha = 0.2

    x = jax.random.normal(k1, (B, K, F), dtype=jnp.float32)
    lin_weight = jax.random.normal(k2, (E, 2 * F), dtype=jnp.float32) / jnp.sqrt(2.0 * F)
    lin_bias = jax.random.normal(k3, (E,), dtype=jnp.float32) * 0.1
    a = jax.random.normal(k4, (E, 1), dtype=jnp.float32) / jnp.sqrt(1.0 * E)
    attn_bias = jax.random.normal(k5, (K, K), dtype=jnp.float32) * 0.1

    ref = _reference_forward(x, lin_weight, lin_bias, a, attn_bias, alpha)

    # Default path (heuristic batch tile -> Bt=1 here so the parallel grid axis
    # stays length-2 / even for the two v7x TensorCores), f32 MXU operands.
    out = temporal_attention_forward(x, lin_weight, lin_bias, a, attn_bias,
                                     alpha=alpha)
    jax.block_until_ready(out)
    assert out.shape == (B, K, F)
    assert jnp.allclose(out, ref, atol=2e-3, rtol=2e-3), "mismatch vs reference"

    # Batched path: both batch elements fused into one grid step (exercises the
    # Bt>1 fused (Bt*K, F) @ (F, 2E) matmul and per-batch unrolled loop).
    out_bt = temporal_attention_forward(x, lin_weight, lin_bias, a, attn_bias,
                                        alpha=alpha, batch_tile=2)
    jax.block_until_ready(out_bt)
    assert jnp.allclose(out_bt, ref, atol=2e-3, rtol=2e-3), "mismatch (batch_tile=2)"

    # bf16 MXU-operand path (v6e/v7x perf knob; f32 accumulate + f32 elementwise).
    out_bf16 = temporal_attention_forward(x, lin_weight, lin_bias, a, attn_bias,
                                          alpha=alpha, mxu_dtype=jnp.bfloat16)
    jax.block_until_ready(out_bf16)
    assert jnp.allclose(out_bf16, ref, atol=5e-2, rtol=5e-2), "mismatch (bf16 MXU)"

    print("KERNEL_OK")
</pallas_src>

<mosaic_0001>
module attributes {stable_mosaic.version = 11 : i64} {
  func.func @_temporal_attn_kernel(%arg0: i32, %arg1: memref<1x8x16xf32, #tpu.memory_space<vmem>>, %arg2: memref<16x64xf32, #tpu.memory_space<vmem>>, %arg3: memref<1x32xf32, #tpu.memory_space<vmem>>, %arg4: memref<1x32xf32, #tpu.memory_space<vmem>>, %arg5: memref<8x8xf32, #tpu.memory_space<vmem>>, %arg6: memref<1x8x16xf32, #tpu.memory_space<vmem>>) attributes {dimension_semantics = [#tpu.dimension_semantics<parallel>], iteration_bounds = array<i64: 2>, scalar_prefetch = 0 : i64, scratch_operands = 0 : i64, tpu.core_type = #tpu.core_type<tc>, window_params = [{transform_indices = @transform_0, window_bounds = array<i64: 1, 8, 16>}, {pipeline_mode = #tpu.pipeline_mode<synchronous>, transform_indices = @transform_1, window_bounds = array<i64: 16, 64>}, {pipeline_mode = #tpu.pipeline_mode<synchronous>, transform_indices = @transform_2, window_bounds = array<i64: 1, 32>}, {pipeline_mode = #tpu.pipeline_mode<synchronous>, transform_indices = @transform_3, window_bounds = array<i64: 1, 32>}, {pipeline_mode = #tpu.pipeline_mode<synchronous>, transform_indices = @transform_4, window_bounds = array<i64: 8, 8>}, {transform_indices = @transform_5, window_bounds = array<i64: 1, 8, 16>}]} {
    %c0 = arith.constant 0 : index
    %c0_0 = arith.constant 0 : index
    %c0_1 = arith.constant 0 : index
    %0 = vector.load %arg1[%c0, %c0_0, %c0_1] : memref<1x8x16xf32, #tpu.memory_space<vmem>>, vector<1x8x16xf32>
    %c0_2 = arith.constant 0 : index
    %c0_3 = arith.constant 0 : index
    %1 = vector.load %arg2[%c0_2, %c0_3] : memref<16x64xf32, #tpu.memory_space<vmem>>, vector<16x64xf32>
    %c0_4 = arith.constant 0 : index
    %c0_5 = arith.constant 0 : index
    %2 = vector.load %arg3[%c0_4, %c0_5] : memref<1x32xf32, #tpu.memory_space<vmem>>, vector<1x32xf32>
    %c0_6 = arith.constant 0 : index
    %c0_7 = arith.constant 0 : index
    %3 = vector.load %arg4[%c0_6, %c0_7] : memref<1x32xf32, #tpu.memory_space<vmem>>, vector<1x32xf32>
    %4 = vector.shape_cast %3 : vector<1x32xf32> to vector<1x1x32xf32>
    %c0_8 = arith.constant 0 : index
    %c0_9 = arith.constant 0 : index
    %5 = vector.load %arg5[%c0_8, %c0_9] : memref<8x8xf32, #tpu.memory_space<vmem>>, vector<8x8xf32>
    %6 = vector.shape_cast %0 : vector<1x8x16xf32> to vector<8x16xf32>
    %cst = arith.constant dense<0.000000e+00> : vector<8x64xf32>
    %7 = tpu.matmul %6, %1, %cst {dimension_numbers = #tpu.dot_dimension_numbers<[1], [0], [0], [1], [0, 0, 1, 1], [], []>} : vector<8x16xf32>, vector<16x64xf32>, vector<8x64xf32> -> vector<8x64xf32>
    %8 = vector.shape_cast %7 : vector<8x64xf32> to vector<1x8x64xf32>
    %9 = vector.extract_strided_slice %8 {offsets = [0, 0, 0], sizes = [1, 8, 32], strides = [1, 1, 1]} : vector<1x8x64xf32> to vector<1x8x32xf32>
    %10 = vector.shape_cast %9 : vector<1x8x32xf32> to vector<8x32xf32>
    %11 = vector.broadcast %2 : vector<1x32xf32> to vector<8x32xf32>
    %12 = arith.addf %10, %11 : vector<8x32xf32>
    %13 = vector.extract_strided_slice %8 {offsets = [0, 0, 32], sizes = [1, 8, 32], strides = [1, 1, 1]} : vector<1x8x64xf32> to vector<1x8x32xf32>
    %14 = vector.shape_cast %13 : vector<1x8x32xf32> to vector<8x32xf32>
    %15 = vector.shape_cast %12 : vector<8x32xf32> to vector<8x1x32xf32>
    %16 = vector.shape_cast %14 : vector<8x32xf32> to vector<1x8x32xf32>
    %17 = vector.broadcast %15 : vector<8x1x32xf32> to vector<8x8x32xf32>
    %18 = vector.broadcast %16 : vector<1x8x32xf32> to vector<8x8x32xf32>
    %19 = arith.addf %17, %18 : vector<8x8x32xf32>
    %cst_10 = arith.constant 0.000000e+00 : f32
    %20 = vector.broadcast %cst_10 : f32 to vector<8x8x32xf32>
    %21 = arith.cmpf oge, %19, %20 : vector<8x8x32xf32>
    %cst_11 = arith.constant 2.000000e-01 : f32
    %22 = vector.broadcast %cst_11 : f32 to vector<8x8x32xf32>
    %23 = arith.mulf %22, %19 : vector<8x8x32xf32>
    %24 = arith.select %21, %19, %23 : vector<8x8x32xi1>, vector<8x8x32xf32>
    %25 = vector.broadcast %4 : vector<1x1x32xf32> to vector<8x8x32xf32>
    %26 = arith.mulf %24, %25 : vector<8x8x32xf32>
    %cst_12 = arith.constant dense<0.000000e+00> : vector<8x8xf32>
    %27 = vector.multi_reduction <add>, %26, %cst_12 [2] : vector<8x8x32xf32> to vector<8x8xf32>
    %28 = arith.addf %27, %5 : vector<8x8xf32>
    %cst_13 = arith.constant dense<0xFF800000> : vector<8xf32>
    %29 = vector.multi_reduction <maximumf>, %28, %cst_13 [1] : vector<8x8xf32> to vector<8xf32>
    %30 = vector.shape_cast %29 : vector<8xf32> to vector<8x1xf32>
    %31 = vector.broadcast %30 : vector<8x1xf32> to vector<8x8xf32>
    %32 = arith.subf %28, %31 : vector<8x8xf32>
    %33 = math.exp %32 : vector<8x8xf32>
    %cst_14 = arith.constant dense<0.000000e+00> : vector<8xf32>
    %34 = vector.multi_reduction <add>, %33, %cst_14 [1] : vector<8x8xf32> to vector<8xf32>
    %35 = vector.shape_cast %34 : vector<8xf32> to vector<8x1xf32>
    %36 = vector.shape_cast %0 : vector<1x8x16xf32> to vector<8x16xf32>
    %cst_15 = arith.constant dense<0.000000e+00> : vector<8x16xf32>
    %37 = tpu.matmul %33, %36, %cst_15 {dimension_numbers = #tpu.dot_dimension_numbers<[1], [0], [0], [1], [0, 0, 1, 1], [], []>} : vector<8x8xf32>, vector<8x16xf32>, vector<8x16xf32> -> vector<8x16xf32>
    %38 = tpu.reciprocal %35 {approx = true} : vector<8x1xf32> -> vector<8x1xf32>
    %39 = vector.broadcast %38 : vector<8x1xf32> to vector<8x16xf32>
    %40 = arith.mulf %37, %39 : vector<8x16xf32>
    %41 = arith.negf %40 : vector<8x16xf32>
    %42 = math.exp %41 : vector<8x16xf32>
    %cst_16 = arith.constant 1.000000e+00 : f32
    %43 = vector.broadcast %cst_16 : f32 to vector<8x16xf32>
    %44 = arith.addf %43, %42 : vector<8x16xf32>
    %45 = arith.divf %43, %44 : vector<8x16xf32>
    %c0_17 = arith.constant 0 : index
    %c0_18 = arith.constant 0 : index
    %c0_19 = arith.constant 0 : index
    %46 = vector.load %arg6[%c0_17, %c0_18, %c0_19] : memref<1x8x16xf32, #tpu.memory_space<vmem>>, vector<1x8x16xf32>
    %47 = vector.shape_cast %46 : vector<1x8x16xf32> to vector<8x16xf32>
    %48 = vector.shape_cast %45 : vector<8x16xf32> to vector<1x8x16xf32>
    tpu.vector_store %arg6[%c0_17, %c0_18, %c0_19], %48 {strides = array<i32>} : memref<1x8x16xf32, #tpu.memory_space<vmem>>, vector<1x8x16xf32>,
    return
  }
  func.func @transform_0(%arg0: i32) -> (i32, i32, i32) {
    %c0_i32 = arith.constant 0 : i32
    %c0_i32_0 = arith.constant 0 : i32
    %c0_i32_1 = arith.constant 0 : i32
    return %arg0, %c0_i32, %c0_i32_0 : i32, i32, i32
  }
  func.func @transform_1(%arg0: i32) -> (i32, i32) {
    %c0_i32 = arith.constant 0 : i32
    %c0_i32_0 = arith.constant 0 : i32
    %c0_i32_1 = arith.constant 0 : i32
    return %c0_i32, %c0_i32_0 : i32, i32
  }
  func.func @transform_2(%arg0: i32) -> (i32, i32) {
    %c0_i32 = arith.constant 0 : i32
    %c0_i32_0 = arith.constant 0 : i32
    %c0_i32_1 = arith.constant 0 : i32
    return %c0_i32, %c0_i32_0 : i32, i32
  }
  func.func @transform_3(%arg0: i32) -> (i32, i32) {
    %c0_i32 = arith.constant 0 : i32
    %c0_i32_0 = arith.constant 0 : i32
    %c0_i32_1 = arith.constant 0 : i32
    return %c0_i32, %c0_i32_0 : i32, i32
  }
  func.func @transform_4(%arg0: i32) -> (i32, i32) {
    %c0_i32 = arith.constant 0 : i32
    %c0_i32_0 = arith.constant 0 : i32
    %c0_i32_1 = arith.constant 0 : i32
    return %c0_i32, %c0_i32_0 : i32, i32
  }
  func.func @transform_5(%arg0: i32) -> (i32, i32, i32) {
    %c0_i32 = arith.constant 0 : i32
    %c0_i32_0 = arith.constant 0 : i32
    %c0_i32_1 = arith.constant 0 : i32
    return %arg0, %c0_i32, %c0_i32_0 : i32, i32, i32
  }
}

</mosaic_0001>

<llo_original>
// kernel: tpu_custom_call.1
$region0: #{tpu_custom_call.1}
  #allocation0 [shape = 'u32[]', space=smem, size = 0x4, offset = 0x4, fixed_abs, tag = 'smem constant byte address 0x4 - core index']
  #allocation1 [shape = 'u32[72,128]{1,0:T(1,128)}', space=vmem, size = 0x9000, scoped, tag = 'internal scratch']
  %s0 = inlined_call_operand.hbm [shape: f32[2,8,16], index: 0, kind: input, shape index: {}]
  %s1 = inlined_call_operand.hbm [shape: f32[16,64], index: 1, kind: input, shape index: {}]
  %s2 = inlined_call_operand.vmem [shape: f32[1,32], index: 2, kind: input, shape index: {}]
  %s3 = inlined_call_operand.vmem [shape: f32[1,32], index: 3, kind: input, shape index: {}]
  %s4 = inlined_call_operand.hbm [shape: f32[8,8], index: 4, kind: input, shape index: {}]
  %s5 = inlined_call_operand.hbm [shape: f32[2,8,16], index: 5, kind: output, shape index: {}]
  %s6 = sld [smem:[#allocation0]]
  $region65: #{tpu_custom_call.1} parent=0
    _
  %s8 = ssub.s32 1, %s6
  %s9 = scalar_select 0, %s8, %s6
  $region1: #{tpu_custom_call.1} parent=0
    #allocation2 [shape = 'u8[8192]{0}', space=vmem, size = 0x2000, scoped, tag = 'input window, operand 0']
    #allocation3 [shape = 's32[2]{0}', space=sflag, size = 0x8, scoped, tag = 'scoped memory for tpu_custom_call.1']
    #allocation4 [shape = 's32[2]{0}', space=sflag, size = 0x8, scoped, tag = 'scoped memory for tpu_custom_call.1']
    #allocation5 [shape = 'u8[8192]{0}', space=vmem, size = 0x2000, scoped, tag = 'input window, operand 1, single buffered']
    #allocation6 [shape = 's32[1]{0}', space=sflag, size = 0x4, scoped, tag = 'scoped memory for tpu_custom_call.1']
    #allocation7 [shape = 'u8[4096]{0}', space=vmem, size = 0x1000, scoped, tag = 'input window, operand 4, single buffered']
    #allocation8 [shape = 'u8[8192]{0}', space=vmem, size = 0x2000, scoped, tag = 'output window, operand 0']
    %10 = vsyncpa [#allocation3], 0
    %s11 = scalar_lea.sflag [#allocation3], 1
    %12 = vsyncpa %s11, 0
    %13 = vsyncpa [#allocation6], 0
    %14 = vsyncpa [#allocation4], 0
    %s15 = scalar_lea.sflag [#allocation4], 1
    %16 = vsyncpa %s15, 0
    loop: start=0, step=1, limit=4
    $region2: #{tpu_custom_call.1} parent=1 // loop_pre_header
      _
    $region3: #{tpu_custom_call.1} parent=1 // loop_header
      %s18 = sphi 0, %s22
      %p19 = scmp.ge.s32.totalorder %s18, 4
      %s28 = sphi 0, %s30
      %s31 = sphi 0, %s28
      %s32 = sphi 0, %s31
      %s48 = sphi 0, %s32
      %s52 = sphi 0, %s52
      %s54 = sphi 0, %s52
      %s55 = sphi 0, %s54
      %s69 = sphi 0, %s55
      %s73 = sphi 0, %s73
      %s75 = sphi 0, %s73
      %s76 = sphi 0, %s75
      %s90 = sphi 0, %s76
      %s94 = sphi 0, %s94
      %s96 = sphi 0, %s94
      %s97 = sphi 0, %s96
      %s111 = sphi 0, %s97
      %s115 = sphi 0, %s115
      %s117 = sphi 0, %s115
      %s118 = sphi 0, %s117
      %s132 = sphi 0, %s118
      %s138 = sphi 0, %s140
      %s141 = sphi 0, %s138
      %s142 = sphi 0, %s141
      %s158 = sphi 0, %s142
    $region4: #{tpu_custom_call.1} parent=1 // loop_header_branch
      %21 = sbr.rel (%p19) target = $region8
    $region5: #{tpu_custom_call.1} parent=1 // loop_body
      %s23 = ssub.s32 %s18, 1
      %s24 = ssub.s32 %s18, 2
      %s25 = sadd.s32 %s18, 1
      %s26 = ssub.s32 %s18, %s25
      %p27 = scmp.eq.s32.totalorder %s26, 0
      %s29 = sadd.s32 %s28, 1
      %s30 = scalar_select %p27, %s28, %s29
      %p33 = pneg %p27
      %p34 = scmp.eq.s32.totalorder %s18, 1
      %p35 = por %p33, %p34
      %p36 = scmp.ne.s32.totalorder %s28, %s31
      %p37 = scmp.eq.s32.totalorder %s18, 0
      %p38 = por %p36, %p37
      %p39 = scmp.ne.s32.totalorder %s28, %s31
      %p40 = scmp.eq.s32.totalorder %s23, 1
      %p41 = por %p39, %p40
      %p42 = scmp.ne.s32.totalorder %s31, %s32
      %p43 = scmp.eq.s32.totalorder %s23, 0
      %p44 = por %p42, %p43
      %p45 = scmp.ne.s32.totalorder %s31, %s32
      %p46 = scmp.eq.s32.totalorder %s24, 1
      %p47 = por %p45, %p46
      %p49 = scmp.ne.s32.totalorder %s32, %s48
      %p50 = scmp.eq.s32.totalorder %s24, 0
      %p51 = por %p49, %p50
      %s53 = sadd.s32 %s52, 1
      %p56 = scmp.eq.s32.totalorder %s18, 1
      %p57 = scmp.ne.s32.totalorder %s52, %s54
      %p58 = scmp.eq.s32.totalorder %s18, 0
      %p59 = por %p57, %p58
      %p60 = scmp.ne.s32.totalorder %s52, %s54
      %p61 = scmp.eq.s32.totalorder %s23, 1
      %p62 = por %p60, %p61
      %p63 = scmp.ne.s32.totalorder %s54, %s55
      %p64 = scmp.eq.s32.totalorder %s23, 0
      %p65 = por %p63, %p64
      %p66 = scmp.ne.s32.totalorder %s54, %s55
      %p67 = scmp.eq.s32.totalorder %s24, 1
      %p68 = por %p66, %p67
      %p70 = scmp.ne.s32.totalorder %s55, %s69
      %p71 = scmp.eq.s32.totalorder %s24, 0
      %p72 = por %p70, %p71
      %s74 = sadd.s32 %s73, 1
      %p77 = scmp.eq.s32.totalorder %s18, 1
      %p78 = scmp.ne.s32.totalorder %s73, %s75
      %p79 = scmp.eq.s32.totalorder %s18, 0
      %p80 = por %p78, %p79
      %p81 = scmp.ne.s32.totalorder %s73, %s75
      %p82 = scmp.eq.s32.totalorder %s23, 1
      %p83 = por %p81, %p82
      %p84 = scmp.ne.s32.totalorder %s75, %s76
      %p85 = scmp.eq.s32.totalorder %s23, 0
      %p86 = por %p84, %p85
      %p87 = scmp.ne.s32.totalorder %s75, %s76
      %p88 = scmp.eq.s32.totalorder %s24, 1
      %p89 = por %p87, %p88
      %p91 = scmp.ne.s32.totalorder %s76, %s90
      %p92 = scmp.eq.s32.totalorder %s24, 0
      %p93 = por %p91, %p92
      %s95 = sadd.s32 %s94, 1
      %p98 = scmp.eq.s32.totalorder %s18, 1
      %p99 = scmp.ne.s32.totalorder %s94, %s96
      %p100 = scmp.eq.s32.totalorder %s18, 0
      %p101 = por %p99, %p100
      %p102 = scmp.ne.s32.totalorder %s94, %s96
      %p103 = scmp.eq.s32.totalorder %s23, 1
      %p104 = por %p102, %p103
      %p105 = scmp.ne.s32.totalorder %s96, %s97
      %p106 = scmp.eq.s32.totalorder %s23, 0
      %p107 = por %p105, %p106
      %p108 = scmp.ne.s32.totalorder %s96, %s97
      %p109 = scmp.eq.s32.totalorder %s24, 1
      %p110 = por %p108, %p109
      %p112 = scmp.ne.s32.totalorder %s97, %s111
      %p113 = scmp.eq.s32.totalorder %s24, 0
      %p114 = por %p112, %p113
      %s116 = sadd.s32 %s115, 1
      %p119 = scmp.eq.s32.totalorder %s18, 1
      %p120 = scmp.ne.s32.totalorder %s115, %s117
      %p121 = scmp.eq.s32.totalorder %s18, 0
      %p122 = por %p120, %p121
      %p123 = scmp.ne.s32.totalorder %s115, %s117
      %p124 = scmp.eq.s32.totalorder %s23, 1
      %p125 = por %p123, %p124
      %p126 = scmp.ne.s32.totalorder %s117, %s118
      %p127 = scmp.eq.s32.totalorder %s23, 0
      %p128 = por %p126, %p127
      %p129 = scmp.ne.s32.totalorder %s117, %s118
      %p130 = scmp.eq.s32.totalorder %s24, 1
      %p131 = por %p129, %p130
      %p133 = scmp.ne.s32.totalorder %s118, %s132
      %p134 = scmp.eq.s32.totalorder %s24, 0
      %p135 = por %p133, %p134
      %s136 = ssub.s32 %s18, %s25
      %p137 = scmp.eq.s32.totalorder %s136, 0
      %s139 = sadd.s32 %s138, 1
      %s140 = scalar_select %p137, %s138, %s139
      %p143 = pneg %p137
      %p144 = scmp.eq.s32.totalorder %s18, 1
      %p145 = por %p143, %p144
      %p146 = scmp.ne.s32.totalorder %s138, %s141
      %p147 = scmp.eq.s32.totalorder %s18, 0
      %p148 = por %p146, %p147
      %p149 = scmp.ne.s32.totalorder %s138, %s141
      %p150 = scmp.eq.s32.totalorder %s23, 1
      %p151 = por %p149, %p150
      %p152 = scmp.ne.s32.totalorder %s141, %s142
      %p153 = scmp.eq.s32.totalorder %s23, 0
      %p154 = por %p152, %p153
      %p155 = scmp.ne.s32.totalorder %s141, %s142
      %p156 = scmp.eq.s32.totalorder %s24, 1
      %p157 = por %p155, %p156
      %p159 = scmp.ne.s32.totalorder %s142, %s158
      %p160 = scmp.eq.s32.totalorder %s24, 0
      %p161 = por %p159, %p160
      %p162 = scmp.le.s32.totalorder 1, %s18
      %p163 = scmp.lt.s32.totalorder %s18, 3
      %p164 = pnand %p162, %p163
      %p165 = pneg %p164
      // Predicated region
      $region9: #{tpu_custom_call.1} parent=5 // pred_check
        _
      $region10: #{tpu_custom_call.1} parent=5 // pred_check_branch
        %167 = sbr.rel (%p164) target = $region12
      $region11: #{tpu_custom_call.1} parent=5 // pred_region
        %s168 = ssub.s32 %s18, 1
        // Predicated region
        $region13: #{tpu_custom_call.1} parent=11 // pred_check
          %p169 = pneg %p65
        $region14: #{tpu_custom_call.1} parent=11 // pred_check_branch
          %171 = sbr.rel (%p169) target = $region16
        $region15: #{tpu_custom_call.1} parent=11 // pred_region
          %173 = vsyncadd [#allocation6], 0
          %s174 = sshll.u32 %s1, 4
          %s175 = int_to_ptr.hbm [resolvable:$true] %s174
          %s176 = sshll.u32 [#allocation5], 4
          %s177 = int_to_ptr.vmem [resolvable:$true] %s176
          %182 = dma.hbm_to_vmem [thread:$0]  %s175, 256, %s177, [#allocation6], 128, 128, 8
        $region16: #{tpu_custom_call.1} parent=11 // pred_fallthru
          _
        // Predicated region
        $region17: #{tpu_custom_call.1} parent=11 // pred_check
          %p183 = pneg %p86
        $region18: #{tpu_custom_call.1} parent=11 // pred_check_branch
          %185 = sbr.rel (%p183) target = $region20
        $region19: #{tpu_custom_call.1} parent=11 // pred_region
          _
        $region20: #{tpu_custom_call.1} parent=11 // pred_fallthru
          _
        // Predicated region
        $region21: #{tpu_custom_call.1} parent=11 // pred_check
          %p186 = pneg %p107
        $region22: #{tpu_custom_call.1} parent=11 // pred_check_branch
          %188 = sbr.rel (%p186) target = $region24
        $region23: #{tpu_custom_call.1} parent=11 // pred_region
          _
        $region24: #{tpu_custom_call.1} parent=11 // pred_fallthru
          _
        // Predicated region
        $region25: #{tpu_custom_call.1} parent=11 // pred_check
          %p189 = pneg %p128
        $region26: #{tpu_custom_call.1} parent=11 // pred_check_branch
          %191 = sbr.rel (%p189) target = $region28
        $region27: #{tpu_custom_call.1} parent=11 // pred_region
          %193 = vsyncadd [#allocation6], 0
          %s195 = sshll.u32 %s4, 4
          %s196 = int_to_ptr.hbm [resolvable:$true] %s195
          %s197 = sshll.u32 [#allocation7], 4
          %s198 = int_to_ptr.vmem [resolvable:$true] %s197
          %200 = dma.hbm_to_vmem [thread:$0]  %s196, 128, %s198, [#allocation6]
        $region28: #{tpu_custom_call.1} parent=11 // pred_fallthru
          _
      $region12: #{tpu_custom_call.1} parent=5 // pred_fallthru
        _
      %p201 = scmp.lt.s32.totalorder %s18, 2
      // Predicated region
      $region29: #{tpu_custom_call.1} parent=5 // pred_check
        %p202 = pneg %p201
      $region30: #{tpu_custom_call.1} parent=5 // pred_check_branch
        %204 = sbr.rel (%p202) target = $region32
      $region31: #{tpu_custom_call.1} parent=5 // pred_region
        // Predicated region
        $region33: #{tpu_custom_call.1} parent=31 // pred_check
          %p205 = pneg %p38
        $region34: #{tpu_custom_call.1} parent=31 // pred_check_branch
          %207 = sbr.rel (%p205) target = $region36
        $region35: #{tpu_custom_call.1} parent=31 // pred_region
          %s208 = sand.u32 %s28, 1
          %s209 = scalar_lea.sflag [#allocation3], %s208
          %s210 = sand.u32 %s28, 1
          %s211 = smul.addr %s210, 8
          %s212 = scalar_lea.vmem [#allocation2], %s211
          %214 = vsyncadd %s209, 0
          %s215 = smul.addr %s18, 8
          %s216 = scalar_lea.hbm %s0, %s215
          %s218 = sshll.u32 %s216, 4
          %s219 = int_to_ptr.hbm [resolvable:$true] %s218
          %s220 = sshll.u32 %s212, 4
          %s221 = int_to_ptr.vmem [resolvable:$true] %s220
          %223 = dma.hbm_to_vmem [thread:$0]  %s219, 128, %s221, %s209
        $region36: #{tpu_custom_call.1} parent=31 // pred_fallthru
          _
      $region32: #{tpu_custom_call.1} parent=5 // pred_fallthru
        _
      %p224 = scmp.le.s32.totalorder 1, %s18
      %p225 = scmp.lt.s32.totalorder %s18, 3
      %p226 = pnand %p224, %p225
      %p227 = pneg %p226
      // Predicated region
      $region37: #{tpu_custom_call.1} parent=5 // pred_check
        _
      $region38: #{tpu_custom_call.1} parent=5 // pred_check_branch
        %229 = sbr.rel (%p226) target = $region40
      $region39: #{tpu_custom_call.1} parent=5 // pred_region
        %s230 = ssub.s32 %s18, 1
        %s231 = sand.u32 %s31, 1
        %s232 = scalar_lea.sflag [#allocation3], %s231
        %s233 = sand.u32 %s31, 1
        %s234 = smul.addr %s233, 8
        %s235 = scalar_lea.vmem [#allocation2], %s234
        // Predicated region
        $region41: #{tpu_custom_call.1} parent=39 // pred_check
          %p236 = pneg %p44
        $region42: #{tpu_custom_call.1} parent=39 // pred_check_branch
          %238 = sbr.rel (%p236) target = $region44
        $region43: #{tpu_custom_call.1} parent=39 // pred_region
          %240 = dma.done %s232, 128
        $region44: #{tpu_custom_call.1} parent=39 // pred_fallthru
          _
        // Predicated region
        $region45: #{tpu_custom_call.1} parent=39 // pred_check
          %p241 = pneg %p65
        $region46: #{tpu_custom_call.1} parent=39 // pred_check_branch
          %243 = sbr.rel (%p241) target = $region48
        $region47: #{tpu_custom_call.1} parent=39 // pred_region
          %245 = dma.done [#allocation6], 256
        $region48: #{tpu_custom_call.1} parent=39 // pred_fallthru
          _
        // Predicated region
        $region49: #{tpu_custom_call.1} parent=39 // pred_check
          %p246 = pneg %p128
        $region50: #{tpu_custom_call.1} parent=39 // pred_check_branch
          %248 = sbr.rel (%p246) target = $region52
        $region51: #{tpu_custom_call.1} parent=39 // pred_region
          %250 = dma.done [#allocation6], 128
        $region52: #{tpu_custom_call.1} parent=39 // pred_fallthru
          _
        %s251 = sand.u32 %s31, 1
        %s252 = scalar_lea.sflag [#allocation3], %s251
        %s253 = sand.u32 %s31, 1
        %s254 = smul.addr %s253, 8
        %s255 = scalar_lea.vmem [#allocation2], %s254
        %p256 = pneg %p44
        %p257 = pneg %p41
        %p258 = pneg %p65
        %p259 = pneg %p62
        %p260 = pneg %p86
        %p261 = pneg %p83
        %p262 = pneg %p107
        %p263 = pneg %p104
        %p264 = pneg %p128
        %p265 = pneg %p125
        %p266 = pneg %p154
        %p267 = pneg %p151
        %s268 = sand.u32 %s141, 1
        %s269 = scalar_lea.sflag [#allocation4], %s268
        %s270 = sand.u32 %s141, 1
        %s271 = smul.addr %s270, 8
        %s272 = scalar_lea.vmem [#allocation8], %s271
        %v273 = vld [vmem:[%s235] sm:$0xff]
        %v274 = vld [vmem:[#allocation5] sm:$0xff]
        %v275 = vld [vmem:[#allocation5 + $0x8] sm:$0xff]
        %v276 = vld [vmem:[%s2] sm:$0x1]
        %v277 = vld [vmem:[%s3] sm:$0x1]
        %v278 = vld [vmem:[#allocation7] sm:$0xff]
        %vm279 = vcmask 130048
        %v281 = vsel %vm279, %v273, 0
        %283 = vmatpush.msra.mxu0 0.0
        %284 = vmatpush.msra.mxu0 0.0
        %285 = vmatpush.msra.mxu0 0.0
        %286 = vmatpush.msra.mxu0 0.0
        %287 = vmatpush.msra.mxu0 0.0
        %288 = vmatpush.msra.mxu0 0.0
        %289 = vmatpush.msra.mxu0 0.0
        %290 = vmatpush.msra.mxu0 0.0
        %291 = vmatpush.msra.mxu0 0.0
        %292 = vmatpush.msra.mxu0 0.0
        %293 = vmatpush.msra.mxu0 0.0
        %294 = vmatpush.msra.mxu0 0.0
        %295 = vmatpush.msra.mxu0 0.0
        %296 = vmatpush.msra.mxu0 0.0
        %297 = vmatpush.msra.mxu0 %v275
        %298 = vmatpush.msra.mxu0 %v274
        %299 = vmatmul.f32.gmra.mxu0 %v281
        %v300 = vpop.f32.mrf.mxu0
        %v301 = vadd.f32 0.0, %v300
        %302 = vdwg.mxu0
        %v304 = vperm.slane %v276, 0
        %v306 = vadd.f32 %v301, %v304
        %v308 = vrot.slane %v306, 1
        %v309 = vrot.slane %v306, 2
        %v310 = vrot.slane %v306, 3
        %v311 = vrot.slane %v306, 4
        %v312 = vrot.slane %v306, 5
        %v313 = vrot.slane %v306, 6
        %v314 = vrot.slane %v306, 7
        %v315 = vperm.slane %v306, 0
        %v316 = vperm.slane %v308, 0
        %v317 = vperm.slane %v309, 0
        %v318 = vperm.slane %v310, 0
        %v319 = vperm.slane %v311, 0
        %v320 = vperm.slane %v312, 0
        %v321 = vperm.slane %v313, 0
        %v322 = vperm.slane %v314, 0
        %332 = vrot.lane.b32.xlu0 %v301, 96
        %v333 = vpop.permute.xlu0 %332
        %v335 = vadd.f32 %v315, %v333
        %v336 = vadd.f32 %v316, %v333
        %v337 = vadd.f32 %v317, %v333
        %v338 = vadd.f32 %v318, %v333
        %v339 = vadd.f32 %v319, %v333
        %v340 = vadd.f32 %v320, %v333
        %v341 = vadd.f32 %v321, %v333
        %v342 = vadd.f32 %v322, %v333
        %vm343 = vcmp.ge.f32.partialorder %v335, 0.0
        %vm344 = vcmp.ge.f32.partialorder %v336, 0.0
        %vm345 = vcmp.ge.f32.partialorder %v337, 0.0
        %vm346 = vcmp.ge.f32.partialorder %v338, 0.0
        %vm347 = vcmp.ge.f32.partialorder %v339, 0.0
        %vm348 = vcmp.ge.f32.partialorder %v340, 0.0
        %vm349 = vcmp.ge.f32.partialorder %v341, 0.0
        %vm350 = vcmp.ge.f32.partialorder %v342, 0.0
        %v351 = vmul.f32 %v335, 0.2
        %v352 = vmul.f32 %v336, 0.2
        %v353 = vmul.f32 %v337, 0.2
        %v354 = vmul.f32 %v338, 0.2
        %v355 = vmul.f32 %v339, 0.2
        %v356 = vmul.f32 %v340, 0.2
        %v357 = vmul.f32 %v341, 0.2
        %v358 = vmul.f32 %v342, 0.2
        %v359 = vsel %vm343, %v335, %v351
        %v360 = vsel %vm344, %v336, %v352
        %v361 = vsel %vm345, %v337, %v353
        %v362 = vsel %vm346, %v338, %v354
        %v363 = vsel %vm347, %v339, %v355
        %v364 = vsel %vm348, %v340, %v356
        %v365 = vsel %vm349, %v341, %v357
        %v366 = vsel %vm350, %v342, %v358
        %v368 = vperm.slane %v277, 0
        %v370 = vmul.f32 %v359, %v368
        %v371 = vmul.f32 %v360, %v368
        %v372 = vmul.f32 %v361, %v368
        %v373 = vmul.f32 %v362, %v368
        %v374 = vmul.f32 %v363, %v368
        %v375 = vmul.f32 %v364, %v368
        %v376 = vmul.f32 %v365, %v368
        %v377 = vmul.f32 %v366, %v368
        %vm378 = vcmask 261120
        %v379 = vsel %vm378, %v370, 0.0
        %380 = vadd.xlane.f32.xlu0 %v379
        %v381 = vpop.xlane.xlu0 %380
        %v382 = vsel %vm378, %v371, 0.0
        %383 = vadd.xlane.f32.xlu0 %v382
        %v384 = vpop.xlane.xlu0 %383
        %v385 = vsel %vm378, %v372, 0.0
        %386 = vadd.xlane.f32.xlu0 %v385
        %v387 = vpop.xlane.xlu0 %386
        %v388 = vsel %vm378, %v373, 0.0
        %389 = vadd.xlane.f32.xlu0 %v388
        %v390 = vpop.xlane.xlu0 %389
        %v391 = vsel %vm378, %v374, 0.0
        %392 = vadd.xlane.f32.xlu0 %v391
        %v393 = vpop.xlane.xlu0 %392
        %v394 = vsel %vm378, %v375, 0.0
        %395 = vadd.xlane.f32.xlu0 %v394
        %v396 = vpop.xlane.xlu0 %395
        %v397 = vsel %vm378, %v376, 0.0
        %398 = vadd.xlane.f32.xlu0 %v397
        %v399 = vpop.xlane.xlu0 %398
        %v400 = vsel %vm378, %v377, 0.0
        %401 = vadd.xlane.f32.xlu0 %v400
        %v402 = vpop.xlane.xlu0 %401
        %v404 = vperm.slane %v278, 0
        %v405 = vlaneseq
        %v406 = vshrl.u32 %v405, 7
        %408 = vset.pattern.permute.xlu0 %v406
        %409 = vperm.xlu0 %408, %v404
        %v410 = vpop.permute.xlu0 %409
        %v411 = vperm.slane %v278, 1
        %v412 = vlaneseq
        %v413 = vshrl.u32 %v412, 7
        %415 = vset.pattern.permute.xlu0 %v413
        %416 = vperm.xlu0 %415, %v411
        %v417 = vpop.permute.xlu0 %416
        %v418 = vperm.slane %v278, 2
        %v419 = vlaneseq
        %v420 = vshrl.u32 %v419, 7
        %422 = vset.pattern.permute.xlu0 %v420
        %423 = vperm.xlu0 %422, %v418
        %v424 = vpop.permute.xlu0 %423
        %v425 = vperm.slane %v278, 3
        %v426 = vlaneseq
        %v427 = vshrl.u32 %v426, 7
        %429 = vset.pattern.permute.xlu0 %v427
        %430 = vperm.xlu0 %429, %v425
        %v431 = vpop.permute.xlu0 %430
        %v432 = vperm.slane %v278, 4
        %v433 = vlaneseq
        %v434 = vshrl.u32 %v433, 7
        %436 = vset.pattern.permute.xlu0 %v434
        %437 = vperm.xlu0 %436, %v432
        %v438 = vpop.permute.xlu0 %437
        %v439 = vperm.slane %v278, 5
        %v440 = vlaneseq
        %v441 = vshrl.u32 %v440, 7
        %443 = vset.pattern.permute.xlu0 %v441
        %444 = vperm.xlu0 %443, %v439
        %v445 = vpop.permute.xlu0 %444
        %v446 = vperm.slane %v278, 6
        %v447 = vlaneseq
        %v448 = vshrl.u32 %v447, 7
        %450 = vset.pattern.permute.xlu0 %v448
        %451 = vperm.xlu0 %450, %v446
        %v452 = vpop.permute.xlu0 %451
        %v453 = vperm.slane %v278, 7
        %v454 = vlaneseq
        %v455 = vshrl.u32 %v454, 7
        %457 = vset.pattern.permute.xlu0 %v455
        %458 = vperm.xlu0 %457, %v453
        %v459 = vpop.permute.xlu0 %458
        %v468 = vadd.f32 %v381, %v410
        %v469 = vadd.f32 %v384, %v417
        %v470 = vadd.f32 %v387, %v424
        %v471 = vadd.f32 %v390, %v431
        %v472 = vadd.f32 %v393, %v438
        %v473 = vadd.f32 %v396, %v445
        %v474 = vadd.f32 %v399, %v452
        %v475 = vadd.f32 %v402, %v459
        %484 = vset.pattern.permute.xlu0 0
        %485 = vperm.xlu0 %484, %v468
        %v486 = vpop.permute.xlu0 %485
        %487 = vset.pattern.permute.xlu0 0
        %488 = vperm.xlu0 %487, %v469
        %v489 = vpop.permute.xlu0 %488
        %490 = vset.pattern.permute.xlu0 0
        %491 = vperm.xlu0 %490, %v470
        %v492 = vpop.permute.xlu0 %491
        %493 = vset.pattern.permute.xlu0 0
        %494 = vperm.xlu0 %493, %v471
        %v495 = vpop.permute.xlu0 %494
        %496 = vset.pattern.permute.xlu0 0
        %497 = vperm.xlu0 %496, %v472
        %v498 = vpop.permute.xlu0 %497
        %499 = vset.pattern.permute.xlu0 0
        %500 = vperm.xlu0 %499, %v473
        %v501 = vpop.permute.xlu0 %500
        %502 = vset.pattern.permute.xlu0 0
        %503 = vperm.xlu0 %502, %v474
        %v504 = vpop.permute.xlu0 %503
        %505 = vset.pattern.permute.xlu0 0
        %506 = vperm.xlu0 %505, %v475
        %v507 = vpop.permute.xlu0 %506
        %v508 = vlaneseq
        %v509 = vand.u32 %v508, 127
        %v510 = vperm.slane %v486, %v509
        %v511 = vperm.slane %v489, %v509
        %v512 = vperm.slane %v492, %v509
        %v513 = vperm.slane %v495, %v509
        %v514 = vperm.slane %v498, %v509
        %v515 = vperm.slane %v501, %v509
        %v516 = vperm.slane %v504, %v509
        %v517 = vperm.slane %v507, %v509
        %vm518 = vcmask 1041409
        %v519 = vsel %vm518, %v511, %v510
        %vm520 = vcmask 1042434
        %v521 = vsel %vm520, %v512, %v519
        %vm522 = vcmask 1043459
        %v523 = vsel %vm522, %v513, %v521
        %vm524 = vcmask 1044484
        %v525 = vsel %vm524, %v514, %v523
        %vm526 = vcmask 1045509
        %v527 = vsel %vm526, %v515, %v525
        %vm528 = vcmask 1046534
        %v529 = vsel %vm528, %v516, %v527
        %vm530 = vcmask 1047559
        %v531 = vsel %vm530, %v517, %v529
        %vm533 = vcmask 64512
        %v534 = vsel %vm533, %v531, -inf
        %535 = vmax.xlane.f32.xlu0 %v534
        %v536 = vpop.xlane.xlu0 %535
        %v538 = vperm.slane %v536, 0
        %v539 = vperm.slane %v536, 1
        %v540 = vperm.slane %v536, 2
        %v541 = vperm.slane %v536, 3
        %v542 = vperm.slane %v536, 4
        %v543 = vperm.slane %v536, 5
        %v544 = vperm.slane %v536, 6
        %v545 = vperm.slane %v536, 7
        %v554 = vsub.f32 %v468, %v538
        %v555 = vsub.f32 %v469, %v539
        %v556 = vsub.f32 %v470, %v540
        %v557 = vsub.f32 %v471, %v541
        %v558 = vsub.f32 %v472, %v542
        %v559 = vsub.f32 %v473, %v543
        %v560 = vsub.f32 %v474, %v544
        %v561 = vsub.f32 %v475, %v545
        %v562 = vmul.f32 %v554, 1.442695
        %v563 = vpow.pop %v562
        %v564 = vmul.f32 %v555, 1.442695
        %v565 = vpow.pop %v564
        %v566 = vmul.f32 %v556, 1.442695
        %v567 = vpow.pop %v566
        %v568 = vmul.f32 %v557, 1.442695
        %v569 = vpow.pop %v568
        %v570 = vmul.f32 %v558, 1.442695
        %v571 = vpow.pop %v570
        %v572 = vmul.f32 %v559, 1.442695
        %v573 = vpow.pop %v572
        %v574 = vmul.f32 %v560, 1.442695
        %v575 = vpow.pop %v574
        %v576 = vmul.f32 %v561, 1.442695
        %v577 = vpow.pop %v576
        %586 = vset.pattern.permute.xlu0 0
        %587 = vperm.xlu0 %586, %v563
        %v588 = vpop.permute.xlu0 %587
        %589 = vset.pattern.permute.xlu0 0
        %590 = vperm.xlu0 %589, %v565
        %v591 = vpop.permute.xlu0 %590
        %592 = vset.pattern.permute.xlu0 0
        %593 = vperm.xlu0 %592, %v567
        %v594 = vpop.permute.xlu0 %593
        %595 = vset.pattern.permute.xlu0 0
        %596 = vperm.xlu0 %595, %v569
        %v597 = vpop.permute.xlu0 %596
        %598 = vset.pattern.permute.xlu0 0
        %599 = vperm.xlu0 %598, %v571
        %v600 = vpop.permute.xlu0 %599
        %601 = vset.pattern.permute.xlu0 0
        %602 = vperm.xlu0 %601, %v573
        %v603 = vpop.permute.xlu0 %602
        %604 = vset.pattern.permute.xlu0 0
        %605 = vperm.xlu0 %604, %v575
        %v606 = vpop.permute.xlu0 %605
        %607 = vset.pattern.permute.xlu0 0
        %608 = vperm.xlu0 %607, %v577
        %v609 = vpop.permute.xlu0 %608
        %v610 = vperm.slane %v588, %v509
        %v611 = vperm.slane %v591, %v509
        %v612 = vperm.slane %v594, %v509
        %v613 = vperm.slane %v597, %v509
        %v614 = vperm.slane %v600, %v509
        %v615 = vperm.slane %v603, %v509
        %v616 = vperm.slane %v606, %v509
        %v617 = vperm.slane %v609, %v509
        %v618 = vsel %vm518, %v611, %v610
        %v619 = vsel %vm520, %v612, %v618
        %v620 = vsel %vm522, %v613, %v619
        %v621 = vsel %vm524, %v614, %v620
        %v622 = vsel %vm526, %v615, %v621
        %v623 = vsel %vm528, %v616, %v622
        %v624 = vsel %vm530, %v617, %v623
        %v626 = vsel %vm533, %v624, 0.0
        %627 = vadd.xlane.f32.xlu0 %v626
        %v628 = vpop.xlane.xlu0 %627
        %v629 = vsel %vm533, %v624, 0
        %631 = vmatpush.msra.mxu0 0.0
        %632 = vmatpush.msra.mxu0 0.0
        %633 = vmatpush.msra.mxu0 0.0
        %634 = vmatpush.msra.mxu0 0.0
        %635 = vmatpush.msra.mxu0 0.0
        %636 = vmatpush.msra.mxu0 0.0
        %637 = vmatpush.msra.mxu0 0.0
        %638 = vmatpush.msra.mxu0 0.0
        %639 = vmatpush.msra.mxu0 0.0
        %640 = vmatpush.msra.mxu0 0.0
        %641 = vmatpush.msra.mxu0 0.0
        %642 = vmatpush.msra.mxu0 0.0
        %643 = vmatpush.msra.mxu0 0.0
        %644 = vmatpush.msra.mxu0 0.0
        %645 = vmatpush.msra.mxu0 0.0
        %646 = vmatpush.msra.mxu0 %v273
        %647 = vmatmul.f32.gmra.mxu0 %v629
        %v648 = vpop.f32.mrf.mxu0
        %v649 = vadd.f32 0.0, %v648
        %650 = vdwg.mxu0
        %v651 = vrcp.pop %v628
        %v652 = vmul.f32 %v649, %v651
        %v653 = vxor.u32 %v652, 2147483648
        %v654 = vmul.f32 %v653, 1.442695
        %v655 = vpow.pop %v654
        %v656 = vadd.f32 %v655, 1.0
        %v657 = vrcp.pop %v656
        %v658 = vmul.f32 %v656, %v657
        %v659 = vsub.f32 1.0, %v658
        %v660 = vmul.f32 %v657, %v659
        %v661 = vadd.f32 %v657, %v660
        %vm662 = vweird.f32 %v656
        %vm663 = vweird.f32 %v657
        %vm664 = vmor %vm662, %vm663
        %v665 = vsel %vm664, %v657, %v661
        %v666 = vand.u32 2147483647, %v656
        %vm667 = vcmp.eq.f32.partialorder %v666, 8.507059e+37
        %v668 = vand.u32 %v656, 2147483648
        %v669 = vor.u32 1.1754944e-38, %v668
        %v670 = vsel %vm667, %v669, %v665
        %v671 = vmul.f32 1.0, %v670
        %672 = vst.msk [vmem:[%s272] sm:$0xff] %vm279, %v671
        %s673 = sand.u32 %s141, 1
        %s674 = scalar_lea.sflag [#allocation4], %s673
        %s675 = sand.u32 %s141, 1
        %s676 = smul.addr %s675, 8
        %s677 = scalar_lea.vmem [#allocation8], %s676
        // Predicated region
        $region53: #{tpu_custom_call.1} parent=39 // pred_check
          %p678 = pneg %p151
        $region54: #{tpu_custom_call.1} parent=39 // pred_check_branch
          %680 = sbr.rel (%p678) target = $region56
        $region55: #{tpu_custom_call.1} parent=39 // pred_region
          %682 = vsyncadd %s674, 0
          %s683 = smul.addr %s23, 8
          %s684 = scalar_lea.hbm %s5, %s683
          %s686 = sshll.u32 %s677, 4
          %s687 = int_to_ptr.vmem [resolvable:$true] %s686
          %s688 = sshll.u32 %s684, 4
          %s689 = int_to_ptr.hbm [resolvable:$true] %s688
          %691 = dma.vmem_to_hbm [thread:$0]  %s687, 128, %s689, %s674
        $region56: #{tpu_custom_call.1} parent=39 // pred_fallthru
          _
      $region40: #{tpu_custom_call.1} parent=5 // pred_fallthru
        _
      %p692 = scmp.le.s32.totalorder 2, %s18
      // Predicated region
      $region57: #{tpu_custom_call.1} parent=5 // pred_check
        %p693 = pneg %p692
      $region58: #{tpu_custom_call.1} parent=5 // pred_check_branch
        %695 = sbr.rel (%p693) target = $region60
      $region59: #{tpu_custom_call.1} parent=5 // pred_region
        %s696 = ssub.s32 %s18, 2
        // Predicated region
        $region61: #{tpu_custom_call.1} parent=59 // pred_check
          %p697 = pneg %p157
        $region62: #{tpu_custom_call.1} parent=59 // pred_check_branch
          %699 = sbr.rel (%p697) target = $region64
        $region63: #{tpu_custom_call.1} parent=59 // pred_region
          %s700 = sand.u32 %s142, 1
          %s701 = scalar_lea.sflag [#allocation4], %s700
          %s702 = sand.u32 %s142, 1
          %s703 = smul.addr %s702, 8
          %s704 = scalar_lea.vmem [#allocation8], %s703
          %706 = dma.done %s701, 128
        $region64: #{tpu_custom_call.1} parent=59 // pred_fallthru
          _
      $region60: #{tpu_custom_call.1} parent=5 // pred_fallthru
        _
    $region6: #{tpu_custom_call.1} parent=1 // loop_footer
      %s22 = sadd.s32 1, %s18
    $region7: #{tpu_custom_call.1} parent=1 // loop_footer_branch
      %17 = sbr.rel target = $region3
    $region8: #{tpu_custom_call.1} parent=1 // loop_exit
      _
    %707 = vsyncpa [#allocation3], 1
    %s708 = scalar_lea.sflag [#allocation3], 1
    %709 = vsyncpa %s708, 1
    %710 = vsyncpa [#allocation6], 1
    %711 = vsyncpa [#allocation4], 1
    %s712 = scalar_lea.sflag [#allocation4], 1
    %713 = vsyncpa %s712, 1

</llo_original>
